<compile_context>
chip_gen: v7x
topology: tpu7x:2x2x1
jax: 0.10.0
libtpu: 0.0.40
codegen_flags: <defaults>
</compile_context>

<pallas_src>
import jax
import jax.numpy as jnp
from jax.experimental import pallas as pl
from jax.experimental.pallas import tpu as pltpu


def _round_up(x, m):
    return (x + m - 1) // m * m


def conv1d_kernel(xc_ref, w_ref, b_ref, o_ref):
    # xc_ref: (KC_pad, TILE_M)  im2col'd input; rows = fused (k, c_in) taps,
    #                           lanes = fused (n, l_out) output positions.
    # w_ref:  (C_out, KC_pad)   weight with the same fused (k, c_in) ordering.
    # b_ref:  (C_out, 1)
    # o_ref:  (C_out, TILE_M)   lane-dense output tile.
    acc = jnp.dot(w_ref[...], xc_ref[...], preferred_element_type=jnp.float32)
    o_ref[...] = (acc + b_ref[...].astype(jnp.float32)).astype(o_ref.dtype)


def conv1d_pallas(x, weight, bias, *, tile_m=1024):
    """x: (N, L, C_in), weight: (C_out, C_in, K), bias: (C_out,) -> (N, L-K+1, C_out)."""
    N, L, C_in = x.shape
    C_out, _, K = weight.shape
    L_out = L - K + 1
    M = N * L_out

    KC = K * C_in
    KC_pad = _round_up(KC, 8)  # sublane-aligned contraction dim

    # im2col directly in lane-dense (KC, M) layout (no big transpose):
    #   xc[k*C_in + ci, n*L_out + l] = x[n, l + k, ci]
    xt = jnp.transpose(x, (2, 0, 1))                                    # (C_in, N, L)
    slabs = [xt[:, :, k:k + L_out] for k in range(K)]                   # K x (C_in, N, L_out)
    xc = jnp.concatenate(slabs, axis=0).reshape(KC, M)                  # (KC, M)

    tile_m = min(tile_m, _round_up(M, 128))
    M_pad = _round_up(M, tile_m)
    xc = jnp.pad(xc, ((0, KC_pad - KC), (0, M_pad - M)))                # (KC_pad, M_pad)

    # w2[co, k*C_in + ci] = weight[co, ci, k]  (matches xc row ordering)
    w2 = jnp.transpose(weight, (0, 2, 1)).reshape(C_out, KC)
    w2 = jnp.pad(w2, ((0, 0), (0, KC_pad - KC)))                        # (C_out, KC_pad)
    b2 = bias.reshape(C_out, 1)

    out_t = pl.pallas_call(
        conv1d_kernel,
        out_shape=jax.ShapeDtypeStruct((C_out, M_pad), x.dtype),
        grid_spec=pltpu.PrefetchScalarGridSpec(
            num_scalar_prefetch=0,
            grid=(M_pad // tile_m,),
            in_specs=[
                pl.BlockSpec((KC_pad, tile_m), lambda i: (0, i)),
                pl.BlockSpec((C_out, KC_pad), lambda i: (0, 0)),
                pl.BlockSpec((C_out, 1), lambda i: (0, 0)),
            ],
            out_specs=pl.BlockSpec((C_out, tile_m), lambda i: (0, i)),
        ),
        compiler_params=pltpu.CompilerParams(
            dimension_semantics=("parallel",),
        ),
    )(xc, w2, b2)

    # Drop padding and restore the PyTorch output layout (N, L_out, C_out).
    return out_t[:, :M].T.reshape(N, L_out, C_out)


def conv1d_reference(x, weight, bias):
    """Pure-JAX reference matching the PyTorch module (dim=2)."""
    xt = jnp.transpose(x, (0, 2, 1))  # (N, C_in, L)
    y = jax.lax.conv_general_dilated(
        xt, weight, window_strides=(1,), padding="VALID",
        dimension_numbers=("NCH", "OIH", "NCH"),
    ) + bias[None, :, None]
    return jnp.transpose(y, (0, 2, 1))


if __name__ == "__main__":
    # Module config: Conv1d(c_in=4, c_out=8, kernel_size=3, dim=2)
    N, L, C_in, C_out, K = 2, 16, 4, 8, 3

    key = jax.random.PRNGKey(0)
    kx, kw, kb = jax.random.split(key, 3)

    x = jax.random.normal(kx, (N, L, C_in), dtype=jnp.float32)
    bound = 1.0 / (C_in * K) ** 0.5
    weight = jax.random.uniform(kw, (C_out, C_in, K), jnp.float32, -bound, bound)
    bias = jax.random.uniform(kb, (C_out,), jnp.float32, -bound, bound)

    out = conv1d_pallas(x, weight, bias)
    out = jax.block_until_ready(out)

    ref = conv1d_reference(x, weight, bias)
    assert out.shape == (N, L - K + 1, C_out), out.shape
    assert jnp.allclose(out, ref, atol=1e-5, rtol=1e-5), "mismatch vs reference"

    print("KERNEL_OK")
</pallas_src>

<mosaic_0001>
module attributes {stable_mosaic.version = 11 : i64} {
  func.func @conv1d_kernel(%arg0: i32, %arg1: memref<16x128xf32, #tpu.memory_space<vmem>>, %arg2: memref<8x16xf32, #tpu.memory_space<vmem>>, %arg3: memref<8x1xf32, #tpu.memory_space<vmem>>, %arg4: memref<8x128xf32, #tpu.memory_space<vmem>>) attributes {dimension_semantics = [#tpu.dimension_semantics<parallel>], iteration_bounds = array<i64: 1>, scalar_prefetch = 0 : i64, scratch_operands = 0 : i64, tpu.core_type = #tpu.core_type<tc>, window_params = [{transform_indices = @transform_0, window_bounds = array<i64: 16, 128>}, {pipeline_mode = #tpu.pipeline_mode<synchronous>, transform_indices = @transform_1, window_bounds = array<i64: 8, 16>}, {pipeline_mode = #tpu.pipeline_mode<synchronous>, transform_indices = @transform_2, window_bounds = array<i64: 8, 1>}, {transform_indices = @transform_3, window_bounds = array<i64: 8, 128>}]} {
    %c0 = arith.constant 0 : index
    %c0_0 = arith.constant 0 : index
    %0 = vector.load %arg2[%c0, %c0_0] : memref<8x16xf32, #tpu.memory_space<vmem>>, vector<8x16xf32>
    %c0_1 = arith.constant 0 : index
    %c0_2 = arith.constant 0 : index
    %1 = vector.load %arg1[%c0_1, %c0_2] : memref<16x128xf32, #tpu.memory_space<vmem>>, vector<16x128xf32>
    %cst = arith.constant dense<0.000000e+00> : vector<8x128xf32>
    %2 = tpu.matmul %0, %1, %cst {dimension_numbers = #tpu.dot_dimension_numbers<[1], [0], [0], [1], [0, 0, 1, 1], [], []>} : vector<8x16xf32>, vector<16x128xf32>, vector<8x128xf32> -> vector<8x128xf32>
    %c0_3 = arith.constant 0 : index
    %c0_4 = arith.constant 0 : index
    %3 = vector.load %arg3[%c0_3, %c0_4] : memref<8x1xf32, #tpu.memory_space<vmem>>, vector<8x1xf32>
    %4 = vector.broadcast %3 : vector<8x1xf32> to vector<8x128xf32>
    %5 = arith.addf %2, %4 : vector<8x128xf32>
    %c0_5 = arith.constant 0 : index
    %c0_6 = arith.constant 0 : index
    %6 = vector.load %arg4[%c0_5, %c0_6] : memref<8x128xf32, #tpu.memory_space<vmem>>, vector<8x128xf32>
    tpu.vector_store %arg4[%c0_5, %c0_6], %5 {strides = array<i32>} : memref<8x128xf32, #tpu.memory_space<vmem>>, vector<8x128xf32>,
    return
  }
  func.func @transform_0(%arg0: i32) -> (i32, i32) {
    %c0_i32 = arith.constant 0 : i32
    %c0_i32_0 = arith.constant 0 : i32
    return %c0_i32, %arg0 : i32, i32
  }
  func.func @transform_1(%arg0: i32) -> (i32, i32) {
    %c0_i32 = arith.constant 0 : i32
    %c0_i32_0 = arith.constant 0 : i32
    %c0_i32_1 = arith.constant 0 : i32
    return %c0_i32, %c0_i32_0 : i32, i32
  }
  func.func @transform_2(%arg0: i32) -> (i32, i32) {
    %c0_i32 = arith.constant 0 : i32
    %c0_i32_0 = arith.constant 0 : i32
    %c0_i32_1 = arith.constant 0 : i32
    return %c0_i32, %c0_i32_0 : i32, i32
  }
  func.func @transform_3(%arg0: i32) -> (i32, i32) {
    %c0_i32 = arith.constant 0 : i32
    %c0_i32_0 = arith.constant 0 : i32
    return %c0_i32, %arg0 : i32, i32
  }
}

</mosaic_0001>

<llo_original>
// kernel: tpu_custom_call.1
$region0: #{tpu_custom_call.1}
  #allocation0 [shape = 'u32[]', space=smem, size = 0x4, offset = 0x4, fixed_abs, tag = 'smem constant byte address 0x4 - core index']
  #allocation1 [shape = 'u32[144,128]{1,0:T(1,128)}', space=vmem, size = 0x12000, scoped, tag = 'internal scratch']
  %s0 = inlined_call_operand.hbm [shape: f32[16,128], index: 0, kind: input, shape index: {}]
  %s1 = inlined_call_operand.vmem [shape: f32[8,16], index: 1, kind: input, shape index: {}]
  %s2 = inlined_call_operand.vmem [shape: f32[8,1], index: 2, kind: input, shape index: {}]
  %s3 = inlined_call_operand.hbm [shape: f32[8,128], index: 3, kind: output, shape index: {}]
  %s4 = sld [smem:[#allocation0]]
  $region26: #{tpu_custom_call.1} parent=0
    _
  %s6 = ssub.s32 1, %s4
  %s7 = scalar_select 0, %s6, %s4
  $region1: #{tpu_custom_call.1} parent=0
    #allocation2 [shape = 'u8[8192]{0}', space=vmem, size = 0x2000, scoped, tag = 'input window, operand 0, single buffered']
    #allocation3 [shape = 's32[1]{0}', space=sflag, size = 0x4, scoped, tag = 'scoped memory for tpu_custom_call.1']
    #allocation4 [shape = 's32[1]{0}', space=sflag, size = 0x4, scoped, tag = 'scoped memory for tpu_custom_call.1']
    #allocation5 [shape = 'u8[4096]{0}', space=vmem, size = 0x1000, scoped, tag = 'output window, operand 0, single buffered']
    %8 = vsyncpa [#allocation3], 0
    %9 = vsyncpa [#allocation4], 0
    // Predicated region
    $region2: #{tpu_custom_call.1} parent=1 // pred_check
      _
    $region3: #{tpu_custom_call.1} parent=1 // pred_check_branch
      %11 = sbr.rel (0) target = $region5
    $region4: #{tpu_custom_call.1} parent=1 // pred_region
      %s13 = ssub.s32 256, 256
      %14 = vsyncadd [#allocation3], %s13
      %s15 = sshll.u32 [#allocation2], 4
      %s16 = int_to_ptr.vmem [resolvable:$true] %s15
      %21 = dma.hbm_to_vmem [thread:$0]  %s0, 256, %s16, [#allocation3], 128, 128, 8
    $region5: #{tpu_custom_call.1} parent=1 // pred_fallthru
      _
    // Predicated region
    $region6: #{tpu_custom_call.1} parent=1 // pred_check
      _
    $region7: #{tpu_custom_call.1} parent=1 // pred_check_branch
      %23 = sbr.rel (0) target = $region9
    $region8: #{tpu_custom_call.1} parent=1 // pred_region
      _
    $region9: #{tpu_custom_call.1} parent=1 // pred_fallthru
      _
    // Predicated region
    $region10: #{tpu_custom_call.1} parent=1 // pred_check
      _
    $region11: #{tpu_custom_call.1} parent=1 // pred_check_branch
      %25 = sbr.rel (0) target = $region13
    $region12: #{tpu_custom_call.1} parent=1 // pred_region
      _
    $region13: #{tpu_custom_call.1} parent=1 // pred_fallthru
      _
    // Predicated region
    $region14: #{tpu_custom_call.1} parent=1 // pred_check
      _
    $region15: #{tpu_custom_call.1} parent=1 // pred_check_branch
      %27 = sbr.rel (0) target = $region17
    $region16: #{tpu_custom_call.1} parent=1 // pred_region
      %28 = dma.done [#allocation3], 256
    $region17: #{tpu_custom_call.1} parent=1 // pred_fallthru
      _
    %v29 = vld [vmem:[%s1] sm:$0xff]
    %v30 = vld [vmem:[#allocation2] sm:$0xff]
    %v31 = vld [vmem:[#allocation2 + $0x8] sm:$0xff]
    %v32 = vld [vmem:[%s2] sm:$0xff]
    %34 = vset.pattern.permute.xlu0 0
    %35 = vperm.xlu0 %34, %v32
    %v36 = vpop.permute.xlu0 %35
    %vm38 = vcmask 130048
    %v40 = vsel %vm38, %v29, 0
    %42 = vmatprep.subr.mxu0 0.0
    %43 = vmatpush1.msra.mxu0 %v30
    %44 = vmatprep.subr.mxu0 0.0
    %45 = vmatpush1.msra.mxu0 %v31
    %46 = vmatprep.subr.mxu0 0.0
    %47 = vmatpush1.msra.mxu0 0.0
    %48 = vmatprep.subr.mxu0 0.0
    %49 = vmatpush1.msra.mxu0 0.0
    %50 = vmatprep.subr.mxu0 0.0
    %51 = vmatpush1.msra.mxu0 0.0
    %52 = vmatprep.subr.mxu0 0.0
    %53 = vmatpush1.msra.mxu0 0.0
    %54 = vmatprep.subr.mxu0 0.0
    %55 = vmatpush1.msra.mxu0 0.0
    %56 = vmatprep.subr.mxu0 0.0
    %57 = vmatpush1.msra.mxu0 0.0
    %58 = vmatprep.subr.mxu0 0.0
    %59 = vmatpush1.msra.mxu0 0.0
    %60 = vmatprep.subr.mxu0 0.0
    %61 = vmatpush1.msra.mxu0 0.0
    %62 = vmatprep.subr.mxu0 0.0
    %63 = vmatpush1.msra.mxu0 0.0
    %64 = vmatprep.subr.mxu0 0.0
    %65 = vmatpush1.msra.mxu0 0.0
    %66 = vmatprep.subr.mxu0 0.0
    %67 = vmatpush1.msra.mxu0 0.0
    %68 = vmatprep.subr.mxu0 0.0
    %69 = vmatpush1.msra.mxu0 0.0
    %70 = vmatprep.subr.mxu0 0.0
    %71 = vmatpush1.msra.mxu0 0.0
    %72 = vmatprep.subr.mxu0 0.0
    %73 = vmatpush1.msra.mxu0 0.0
    %74 = vmatprep.subr.mxu0 0.0
    %75 = vmatpush1.msra.mxu0 0.0
    %76 = vmatprep.subr.mxu0 0.0
    %77 = vmatpush1.msra.mxu0 0.0
    %78 = vmatprep.subr.mxu0 0.0
    %79 = vmatpush1.msra.mxu0 0.0
    %80 = vmatprep.subr.mxu0 0.0
    %81 = vmatpush1.msra.mxu0 0.0
    %82 = vmatprep.subr.mxu0 0.0
    %83 = vmatpush1.msra.mxu0 0.0
    %84 = vmatprep.subr.mxu0 0.0
    %85 = vmatpush1.msra.mxu0 0.0
    %86 = vmatprep.subr.mxu0 0.0
    %87 = vmatpush1.msra.mxu0 0.0
    %88 = vmatprep.subr.mxu0 0.0
    %89 = vmatpush1.msra.mxu0 0.0
    %90 = vmatprep.subr.mxu0 0.0
    %91 = vmatpush1.msra.mxu0 0.0
    %92 = vmatprep.subr.mxu0 0.0
    %93 = vmatpush1.msra.mxu0 0.0
    %94 = vmatprep.subr.mxu0 0.0
    %95 = vmatpush1.msra.mxu0 0.0
    %96 = vmatprep.subr.mxu0 0.0
    %97 = vmatpush1.msra.mxu0 0.0
    %98 = vmatprep.subr.mxu0 0.0
    %99 = vmatpush1.msra.mxu0 0.0
    %100 = vmatprep.subr.mxu0 0.0
    %101 = vmatpush1.msra.mxu0 0.0
    %102 = vmatprep.subr.mxu0 0.0
    %103 = vmatpush1.msra.mxu0 0.0
    %104 = vmatprep.subr.mxu0 0.0
    %105 = vmatpush1.msra.mxu0 0.0
    %106 = vmatprep.mubr.f32.mxu0 0.0
    %107 = vmatmul.mubr.f32.gmra.mrb[0].mxu0 %v40
    %v108 = vpop.f32.mrb[0].mxu0
    %v109 = vadd.f32 %v36, %v108
    %v110 = vpop.f32.mrb[0].mxu0
    %111 = vdwg.mxu0
    %112 = vst [vmem:[#allocation5] sm:$0xff] %v109
    // Predicated region
    $region18: #{tpu_custom_call.1} parent=1 // pred_check
      _
    $region19: #{tpu_custom_call.1} parent=1 // pred_check_branch
      %114 = sbr.rel (0) target = $region21
    $region20: #{tpu_custom_call.1} parent=1 // pred_region
      %s116 = ssub.s32 128, 128
      %117 = vsyncadd [#allocation4], %s116
      %s119 = sshll.u32 [#allocation5], 4
      %s120 = int_to_ptr.vmem [resolvable:$true] %s119
      %122 = dma.vmem_to_hbm [thread:$0]  %s120, 128, %s3, [#allocation4]
    $region21: #{tpu_custom_call.1} parent=1 // pred_fallthru
      _
    // Predicated region
    $region22: #{tpu_custom_call.1} parent=1 // pred_check
      _
    $region23: #{tpu_custom_call.1} parent=1 // pred_check_branch
      %124 = sbr.rel (0) target = $region25
    $region24: #{tpu_custom_call.1} parent=1 // pred_region
      %125 = dma.done [#allocation4], 128
    $region25: #{tpu_custom_call.1} parent=1 // pred_fallthru
      _
    %126 = vsyncpa [#allocation3], 1
    %127 = vsyncpa [#allocation4], 1

</llo_original>
